<compile_context>
chip_gen: v7x
topology: tpu7x:2x2x1
jax: 0.10.0
libtpu: 0.0.40
codegen_flags: <defaults>
</compile_context>

<pallas_src>
import functools

import jax
import jax.numpy as jnp
from jax.experimental import pallas as pl
from jax.experimental.pallas import tpu as pltpu

HIDDEN = 256
MAX_TILE_B = 1024  # rows per grid step; ~3 MB working set, far under VMEM


def _round_up(n, m):
    return ((n + m - 1) // m) * m


def _policy_kernel(x_ref, w1_ref, b1_ref, w2_ref, b2_ref, wh_ref, bh_ref,
                   out_ref):
    # fc1 + relu  (bf16 operands, f32 accumulate; bias/relu in f32)
    h1 = jnp.dot(x_ref[...], w1_ref[...], preferred_element_type=jnp.float32)
    h1 = jnp.maximum(h1 + b1_ref[...], 0.0)
    # fc2 + relu
    h2 = jnp.dot(h1.astype(jnp.bfloat16), w2_ref[...],
                 preferred_element_type=jnp.float32)
    h2 = jnp.maximum(h2 + b2_ref[...], 0.0)
    # fused heads: columns [0, A) are mu (pre-tanh), [A, 2A) are logstd,
    # remaining lanes are zero padding (lane-dense unmasked stores).
    h = jnp.dot(h2.astype(jnp.bfloat16), wh_ref[...],
                preferred_element_type=jnp.float32)
    out_ref[...] = (h + bh_ref[...]).astype(out_ref.dtype)


def prepare_params(params):
    """One-time (out of the per-call path) param prep: fuse the two A-wide
    heads into a single lane-dense [256, P] matmul and cast matmul weights
    to bf16. Biases stay f32."""
    A = params["wmu"].shape[1]
    P = max(128, _round_up(2 * A, 128))

    wh = jnp.zeros((HIDDEN, P), jnp.float32)
    wh = wh.at[:, :A].set(params["wmu"]).at[:, A:2 * A].set(params["wls"])
    bh = jnp.zeros((1, P), jnp.float32)
    bh = bh.at[:, :A].set(params["bmu"][0]).at[:, A:2 * A].set(params["bls"][0])

    # TODO(synk): on v7x, w2 could additionally be quantized to fp8 for ~2x
    # MXU throughput on the dominant 256x256 matmul.
    return dict(
        w1=params["w1"].astype(jnp.bfloat16),
        b1=params["b1"].astype(jnp.float32),
        w2=params["w2"].astype(jnp.bfloat16),
        b2=params["b2"].astype(jnp.float32),
        wh=wh.astype(jnp.bfloat16),
        bh=bh.astype(jnp.float32),
    )


@functools.partial(jax.jit, static_argnames=("action_space", "min_tiles"))
def gaussian_policy_forward(x, prepared, action_space, min_tiles=1):
    """Pallas implementation of GaussianPolicy.forward.

    x: [B, S] float32
    prepared: output of prepare_params()
    action_space: static int A
    min_tiles: set to 2 on v7x so both TensorCores get work for small B.
    returns (mu [B, A] f32, logstd [B, A] f32)
    """
    B, S = x.shape
    A = action_space
    P = prepared["wh"].shape[1]

    # ---- balanced batch tiling: minimal padding, amortized step overhead ----
    num_tiles = max(min_tiles, pl.cdiv(B, MAX_TILE_B))
    tile_b = max(8, _round_up(pl.cdiv(B, num_tiles), 8))
    B_pad = num_tiles * tile_b

    x = x.astype(jnp.bfloat16)
    if B_pad != B:
        x = jnp.pad(x, ((0, B_pad - B), (0, 0)))

    # Weights/biases: full-array blocks with constant index_maps so they stay
    # resident in VMEM across grid steps (no per-step re-DMA).
    def whole(shape):
        return pl.BlockSpec(shape, lambda i: (0,) * len(shape))

    in_specs = [
        pl.BlockSpec((tile_b, S), lambda i: (i, 0)),   # x
        whole(prepared["w1"].shape), whole(prepared["b1"].shape),
        whole(prepared["w2"].shape), whole(prepared["b2"].shape),
        whole(prepared["wh"].shape), whole(prepared["bh"].shape),
    ]
    out_specs = pl.BlockSpec((tile_b, P), lambda i: (i, 0))

    out = pl.pallas_call(
        _policy_kernel,
        out_shape=jax.ShapeDtypeStruct((B_pad, P), jnp.bfloat16),
        grid_spec=pl.GridSpec(
            grid=(num_tiles,),
            in_specs=in_specs,
            out_specs=out_specs,
        ),
        compiler_params=pltpu.CompilerParams(
            dimension_semantics=("parallel",)),
    )(x, prepared["w1"], prepared["b1"], prepared["w2"], prepared["b2"],
      prepared["wh"], prepared["bh"])

    # Slice the tiny [B, 2A] head, upcast, and apply tanh to mu only here
    # (O(B*A) work that fuses with the slice) instead of over the whole slab.
    head = out[:B, :2 * A].astype(jnp.float32)
    mu = jnp.tanh(head[:, :A])
    logstd = head[:, A:]
    return mu, logstd


def init_params(key, state_space, action_space):
    """Deterministic synthetic params (PyTorch Linear shapes, transposed)."""
    ks = jax.random.split(key, 8)

    def lin(kw, kb, fan_in, fan_out):
        bound = 1.0 / jnp.sqrt(fan_in)
        w = jax.random.uniform(kw, (fan_in, fan_out), jnp.float32, -bound, bound)
        b = jax.random.uniform(kb, (1, fan_out), jnp.float32, -bound, bound)
        return w, b

    w1, b1 = lin(ks[0], ks[1], state_space, HIDDEN)
    w2, b2 = lin(ks[2], ks[3], HIDDEN, HIDDEN)
    wmu, bmu = lin(ks[4], ks[5], HIDDEN, action_space)
    wls, bls = lin(ks[6], ks[7], HIDDEN, action_space)
    return dict(w1=w1, b1=b1, w2=w2, b2=b2,
                wmu=wmu, bmu=bmu, wls=wls, bls=bls)


def reference_forward(x, p):
    h1 = jax.nn.relu(x @ p["w1"] + p["b1"])
    h2 = jax.nn.relu(h1 @ p["w2"] + p["b2"])
    mu = jnp.tanh(h2 @ p["wmu"] + p["bmu"])
    logstd = h2 @ p["wls"] + p["bls"]
    return mu, logstd


if __name__ == "__main__":
    key = jax.random.PRNGKey(0)
    k_x, k_p = jax.random.split(key)

    # Small shapes; batch deliberately NOT a multiple of 8 to exercise the
    # balanced-tile + padding path.
    batch = 10
    state_space = 32
    action_space = 4

    x = jax.random.normal(k_x, (batch, state_space), dtype=jnp.float32)
    params = init_params(k_p, state_space, action_space)
    prepared = prepare_params(params)       # one-time, outside the call path
    jax.block_until_ready(prepared)

    mu, logstd = gaussian_policy_forward(x, prepared, action_space)
    jax.block_until_ready((mu, logstd))

    mu_ref, logstd_ref = reference_forward(x, params)
    assert mu.shape == (batch, action_space)
    assert logstd.shape == (batch, action_space)
    # bf16 matmul operands + bf16 output slab => relaxed tolerance vs f32 ref.
    assert jnp.allclose(mu, mu_ref, atol=3e-2, rtol=3e-2)
    assert jnp.allclose(logstd, logstd_ref, atol=3e-2, rtol=3e-2)

    # TODO(synk): sample_action / _compute_logprob use torch.randn_like
    # (stochastic) and the Adam optimizer; only the deterministic forward()
    # is implemented as a kernel.
    print("KERNEL_OK")
</pallas_src>

<mosaic_0001>
module attributes {stable_mosaic.version = 11 : i64} {
  func.func @_policy_kernel(%arg0: i32, %arg1: memref<16x32xbf16, #tpu.memory_space<vmem>>, %arg2: memref<32x256xbf16, #tpu.memory_space<vmem>>, %arg3: memref<1x256xf32, #tpu.memory_space<vmem>>, %arg4: memref<256x256xbf16, #tpu.memory_space<vmem>>, %arg5: memref<1x256xf32, #tpu.memory_space<vmem>>, %arg6: memref<256x128xbf16, #tpu.memory_space<vmem>>, %arg7: memref<1x128xf32, #tpu.memory_space<vmem>>, %arg8: memref<16x128xbf16, #tpu.memory_space<vmem>>) attributes {dimension_semantics = [#tpu.dimension_semantics<parallel>], iteration_bounds = array<i64: 1>, scalar_prefetch = 0 : i64, scratch_operands = 0 : i64, tpu.core_type = #tpu.core_type<tc>, window_params = [{transform_indices = @transform_0, window_bounds = array<i64: 16, 32>}, {pipeline_mode = #tpu.pipeline_mode<synchronous>, transform_indices = @transform_1, window_bounds = array<i64: 32, 256>}, {pipeline_mode = #tpu.pipeline_mode<synchronous>, transform_indices = @transform_2, window_bounds = array<i64: 1, 256>}, {pipeline_mode = #tpu.pipeline_mode<synchronous>, transform_indices = @transform_3, window_bounds = array<i64: 256, 256>}, {pipeline_mode = #tpu.pipeline_mode<synchronous>, transform_indices = @transform_4, window_bounds = array<i64: 1, 256>}, {pipeline_mode = #tpu.pipeline_mode<synchronous>, transform_indices = @transform_5, window_bounds = array<i64: 256, 128>}, {pipeline_mode = #tpu.pipeline_mode<synchronous>, transform_indices = @transform_6, window_bounds = array<i64: 1, 128>}, {transform_indices = @transform_7, window_bounds = array<i64: 16, 128>}]} {
    %c0 = arith.constant 0 : index
    %c0_0 = arith.constant 0 : index
    %0 = vector.load %arg1[%c0, %c0_0] : memref<16x32xbf16, #tpu.memory_space<vmem>>, vector<16x32xbf16>
    %c0_1 = arith.constant 0 : index
    %c0_2 = arith.constant 0 : index
    %1 = vector.load %arg2[%c0_1, %c0_2] : memref<32x256xbf16, #tpu.memory_space<vmem>>, vector<32x256xbf16>
    %cst = arith.constant dense<0.000000e+00> : vector<16x256xf32>
    %2 = tpu.matmul %0, %1, %cst {dimension_numbers = #tpu.dot_dimension_numbers<[1], [0], [0], [1], [0, 0, 1, 1], [], []>} : vector<16x32xbf16>, vector<32x256xbf16>, vector<16x256xf32> -> vector<16x256xf32>
    %c0_3 = arith.constant 0 : index
    %c0_4 = arith.constant 0 : index
    %3 = vector.load %arg3[%c0_3, %c0_4] : memref<1x256xf32, #tpu.memory_space<vmem>>, vector<1x256xf32>
    %4 = vector.broadcast %3 : vector<1x256xf32> to vector<16x256xf32>
    %5 = arith.addf %2, %4 : vector<16x256xf32>
    %cst_5 = arith.constant 0.000000e+00 : f32
    %6 = vector.broadcast %cst_5 : f32 to vector<16x256xf32>
    %7 = arith.maximumf %5, %6 : vector<16x256xf32>
    %8 = arith.truncf %7 : vector<16x256xf32> to vector<16x256xbf16>
    %c0_6 = arith.constant 0 : index
    %c0_7 = arith.constant 0 : index
    %9 = vector.load %arg4[%c0_6, %c0_7] : memref<256x256xbf16, #tpu.memory_space<vmem>>, vector<256x256xbf16>
    %cst_8 = arith.constant dense<0.000000e+00> : vector<16x256xf32>
    %10 = tpu.matmul %8, %9, %cst_8 {dimension_numbers = #tpu.dot_dimension_numbers<[1], [0], [0], [1], [0, 0, 1, 1], [], []>} : vector<16x256xbf16>, vector<256x256xbf16>, vector<16x256xf32> -> vector<16x256xf32>
    %c0_9 = arith.constant 0 : index
    %c0_10 = arith.constant 0 : index
    %11 = vector.load %arg5[%c0_9, %c0_10] : memref<1x256xf32, #tpu.memory_space<vmem>>, vector<1x256xf32>
    %12 = vector.broadcast %11 : vector<1x256xf32> to vector<16x256xf32>
    %13 = arith.addf %10, %12 : vector<16x256xf32>
    %cst_11 = arith.constant 0.000000e+00 : f32
    %14 = vector.broadcast %cst_11 : f32 to vector<16x256xf32>
    %15 = arith.maximumf %13, %14 : vector<16x256xf32>
    %16 = arith.truncf %15 : vector<16x256xf32> to vector<16x256xbf16>
    %c0_12 = arith.constant 0 : index
    %c0_13 = arith.constant 0 : index
    %17 = vector.load %arg6[%c0_12, %c0_13] : memref<256x128xbf16, #tpu.memory_space<vmem>>, vector<256x128xbf16>
    %cst_14 = arith.constant dense<0.000000e+00> : vector<16x128xf32>
    %18 = tpu.matmul %16, %17, %cst_14 {dimension_numbers = #tpu.dot_dimension_numbers<[1], [0], [0], [1], [0, 0, 1, 1], [], []>} : vector<16x256xbf16>, vector<256x128xbf16>, vector<16x128xf32> -> vector<16x128xf32>
    %c0_15 = arith.constant 0 : index
    %c0_16 = arith.constant 0 : index
    %19 = vector.load %arg7[%c0_15, %c0_16] : memref<1x128xf32, #tpu.memory_space<vmem>>, vector<1x128xf32>
    %20 = vector.broadcast %19 : vector<1x128xf32> to vector<16x128xf32>
    %21 = arith.addf %18, %20 : vector<16x128xf32>
    %22 = arith.truncf %21 : vector<16x128xf32> to vector<16x128xbf16>
    %c0_17 = arith.constant 0 : index
    %c0_18 = arith.constant 0 : index
    %23 = vector.load %arg8[%c0_17, %c0_18] : memref<16x128xbf16, #tpu.memory_space<vmem>>, vector<16x128xbf16>
    tpu.vector_store %arg8[%c0_17, %c0_18], %22 {strides = array<i32>} : memref<16x128xbf16, #tpu.memory_space<vmem>>, vector<16x128xbf16>,
    return
  }
  func.func @transform_0(%arg0: i32) -> (i32, i32) {
    %c0_i32 = arith.constant 0 : i32
    %c0_i32_0 = arith.constant 0 : i32
    return %arg0, %c0_i32 : i32, i32
  }
  func.func @transform_1(%arg0: i32) -> (i32, i32) {
    %c0_i32 = arith.constant 0 : i32
    %c0_i32_0 = arith.constant 0 : i32
    %c0_i32_1 = arith.constant 0 : i32
    return %c0_i32, %c0_i32_0 : i32, i32
  }
  func.func @transform_2(%arg0: i32) -> (i32, i32) {
    %c0_i32 = arith.constant 0 : i32
    %c0_i32_0 = arith.constant 0 : i32
    %c0_i32_1 = arith.constant 0 : i32
    return %c0_i32, %c0_i32_0 : i32, i32
  }
  func.func @transform_3(%arg0: i32) -> (i32, i32) {
    %c0_i32 = arith.constant 0 : i32
    %c0_i32_0 = arith.constant 0 : i32
    %c0_i32_1 = arith.constant 0 : i32
    return %c0_i32, %c0_i32_0 : i32, i32
  }
  func.func @transform_4(%arg0: i32) -> (i32, i32) {
    %c0_i32 = arith.constant 0 : i32
    %c0_i32_0 = arith.constant 0 : i32
    %c0_i32_1 = arith.constant 0 : i32
    return %c0_i32, %c0_i32_0 : i32, i32
  }
  func.func @transform_5(%arg0: i32) -> (i32, i32) {
    %c0_i32 = arith.constant 0 : i32
    %c0_i32_0 = arith.constant 0 : i32
    %c0_i32_1 = arith.constant 0 : i32
    return %c0_i32, %c0_i32_0 : i32, i32
  }
  func.func @transform_6(%arg0: i32) -> (i32, i32) {
    %c0_i32 = arith.constant 0 : i32
    %c0_i32_0 = arith.constant 0 : i32
    %c0_i32_1 = arith.constant 0 : i32
    return %c0_i32, %c0_i32_0 : i32, i32
  }
  func.func @transform_7(%arg0: i32) -> (i32, i32) {
    %c0_i32 = arith.constant 0 : i32
    %c0_i32_0 = arith.constant 0 : i32
    return %arg0, %c0_i32 : i32, i32
  }
}

</mosaic_0001>

<llo_original>
// kernel: gaussian_policy_forward.1
$region0: #{gaussian_policy_forward.1}
  #allocation0 [shape = 'u32[]', space=smem, size = 0x4, offset = 0x4, fixed_abs, tag = 'smem constant byte address 0x4 - core index']
  #allocation1 [shape = 'u32[144,128]{1,0:T(1,128)}', space=vmem, size = 0x12000, scoped, tag = 'internal scratch']
  %s0 = inlined_call_operand.vmem [shape: bf16[16,32], index: 0, kind: input, shape index: {}]
  %s1 = inlined_call_operand.vmem [shape: bf16[32,256], index: 1, kind: input, shape index: {}]
  %s2 = inlined_call_operand.vmem [shape: f32[1,256], index: 2, kind: input, shape index: {}]
  %s3 = inlined_call_operand.hbm [shape: bf16[256,256], index: 3, kind: input, shape index: {}]
  %s4 = inlined_call_operand.vmem [shape: f32[1,256], index: 4, kind: input, shape index: {}]
  %s5 = inlined_call_operand.hbm [shape: bf16[256,128], index: 5, kind: input, shape index: {}]
  %s6 = inlined_call_operand.vmem [shape: f32[1,128], index: 6, kind: input, shape index: {}]
  %s7 = inlined_call_operand.vmem [shape: bf16[16,128], index: 7, kind: output, shape index: {}]
  %s8 = sld [smem:[#allocation0]]
  $region46: #{gaussian_policy_forward.1} parent=0
    _
  %s10 = ssub.s32 1, %s8
  %s11 = scalar_select 0, %s10, %s8
  $region1: #{gaussian_policy_forward.1} parent=0
    #allocation2 [shape = 'u8[131072]{0}', space=vmem, size = 0x20000, scoped, tag = 'input window, operand 3, single buffered']
    #allocation3 [shape = 's32[1]{0}', space=sflag, size = 0x4, scoped, tag = 'scoped memory for gaussian_policy_forward.1']
    #allocation4 [shape = 'u8[65536]{0}', space=vmem, size = 0x10000, scoped, tag = 'input window, operand 5, single buffered']
    #allocation5 [shape = 's32[1]{0}', space=sflag, size = 0x4, scoped, tag = 'scoped memory for gaussian_policy_forward.1']
    %12 = vsyncpa [#allocation3], 0
    %13 = vsyncpa [#allocation5], 0
    // Predicated region
    $region2: #{gaussian_policy_forward.1} parent=1 // pred_check
      _
    $region3: #{gaussian_policy_forward.1} parent=1 // pred_check_branch
      %15 = sbr.rel (0) target = $region5
    $region4: #{gaussian_policy_forward.1} parent=1 // pred_region
      _
    $region5: #{gaussian_policy_forward.1} parent=1 // pred_fallthru
      _
    // Predicated region
    $region6: #{gaussian_policy_forward.1} parent=1 // pred_check
      _
    $region7: #{gaussian_policy_forward.1} parent=1 // pred_check_branch
      %17 = sbr.rel (0) target = $region9
    $region8: #{gaussian_policy_forward.1} parent=1 // pred_region
      _
    $region9: #{gaussian_policy_forward.1} parent=1 // pred_fallthru
      _
    // Predicated region
    $region10: #{gaussian_policy_forward.1} parent=1 // pred_check
      _
    $region11: #{gaussian_policy_forward.1} parent=1 // pred_check_branch
      %19 = sbr.rel (0) target = $region13
    $region12: #{gaussian_policy_forward.1} parent=1 // pred_region
      _
    $region13: #{gaussian_policy_forward.1} parent=1 // pred_fallthru
      _
    // Predicated region
    $region14: #{gaussian_policy_forward.1} parent=1 // pred_check
      _
    $region15: #{gaussian_policy_forward.1} parent=1 // pred_check_branch
      %21 = sbr.rel (0) target = $region17
    $region16: #{gaussian_policy_forward.1} parent=1 // pred_region
      %s23 = ssub.s32 4096, 4096
      %24 = vsyncadd [#allocation3], %s23
      %s25 = sshll.u32 [#allocation2], 4
      %s26 = int_to_ptr.vmem [resolvable:$true] %s25
      %31 = dma.hbm_to_vmem [thread:$0]  %s3, 4096, %s26, [#allocation3], 128, 128, 8
    $region17: #{gaussian_policy_forward.1} parent=1 // pred_fallthru
      _
    // Predicated region
    $region18: #{gaussian_policy_forward.1} parent=1 // pred_check
      _
    $region19: #{gaussian_policy_forward.1} parent=1 // pred_check_branch
      %33 = sbr.rel (0) target = $region21
    $region20: #{gaussian_policy_forward.1} parent=1 // pred_region
      _
    $region21: #{gaussian_policy_forward.1} parent=1 // pred_fallthru
      _
    // Predicated region
    $region22: #{gaussian_policy_forward.1} parent=1 // pred_check
      _
    $region23: #{gaussian_policy_forward.1} parent=1 // pred_check_branch
      %35 = sbr.rel (0) target = $region25
    $region24: #{gaussian_policy_forward.1} parent=1 // pred_region
      %s37 = ssub.s32 2048, 2048
      %38 = vsyncadd [#allocation5], %s37
      %s39 = sshll.u32 [#allocation4], 4
      %s40 = int_to_ptr.vmem [resolvable:$true] %s39
      %45 = dma.hbm_to_vmem [thread:$0]  %s5, 2048, %s40, [#allocation5], 64, 64, 4
    $region25: #{gaussian_policy_forward.1} parent=1 // pred_fallthru
      _
    // Predicated region
    $region26: #{gaussian_policy_forward.1} parent=1 // pred_check
      _
    $region27: #{gaussian_policy_forward.1} parent=1 // pred_check_branch
      %47 = sbr.rel (0) target = $region29
    $region28: #{gaussian_policy_forward.1} parent=1 // pred_region
      _
    $region29: #{gaussian_policy_forward.1} parent=1 // pred_fallthru
      _
    // Predicated region
    $region30: #{gaussian_policy_forward.1} parent=1 // pred_check
      _
    $region31: #{gaussian_policy_forward.1} parent=1 // pred_check_branch
      %49 = sbr.rel (0) target = $region33
    $region32: #{gaussian_policy_forward.1} parent=1 // pred_region
      %50 = dma.done [#allocation3], 4096
    $region33: #{gaussian_policy_forward.1} parent=1 // pred_fallthru
      _
    // Predicated region
    $region34: #{gaussian_policy_forward.1} parent=1 // pred_check
      _
    $region35: #{gaussian_policy_forward.1} parent=1 // pred_check_branch
      %52 = sbr.rel (0) target = $region37
    $region36: #{gaussian_policy_forward.1} parent=1 // pred_region
      %53 = dma.done [#allocation5], 2048
    $region37: #{gaussian_policy_forward.1} parent=1 // pred_fallthru
      _
    %v55 = vld [vmem:[%s0] sm:$0xf]
    %v56 = vld [vmem:[%s0 + $0x4] sm:$0xf]
    %v57 = vld [vmem:[%s1] sm:$0xff]
    %v58 = vld [vmem:[%s1 + $0x8] sm:$0xff]
    %v59 = vld [vmem:[%s1 + $0x10] sm:$0xff]
    %v60 = vld [vmem:[%s1 + $0x18] sm:$0xff]
    %v61 = vld [vmem:[%s2] sm:$0x3]
    %v63 = vlaneseq
    %v64 = vshrl.u32 %v63, 7
    %v65 = vsub.s32 0, %v64
    %v66 = vrot.slane %v61, %v65
    %v67 = vlaneseq
    %v68 = vshrl.u32 %v67, 7
    %v69 = vsub.s32 1, %v68
    %v70 = vrot.slane %v61, %v69
    %v75 = vunpack.c.l.b16 %v55
    %v76 = vunpack.c.l.b16 %v56
    %v77 = vpack.c.b16 %v76, %v75
    %v82 = vunpack.c.l.b16 %v57
    %v83 = vunpack.c.h.b16 %v57
    %v84 = vunpack.c.l.b16 %v58
    %v85 = vunpack.c.h.b16 %v58
    %v86 = vunpack.c.l.b16 %v59
    %v87 = vunpack.c.h.b16 %v59
    %v88 = vunpack.c.l.b16 %v60
    %v89 = vunpack.c.h.b16 %v60
    %v90 = vpack.c.b16 %v84, %v82
    %v91 = vpack.c.b16 %v85, %v83
    %v92 = vpack.c.b16 %v88, %v86
    %v93 = vpack.c.b16 %v89, %v87
    %vm98 = vcmask 261120
    %v100 = vsel %vm98, %v77, 0
    %102 = vmatprep.subr.bf16.mxu0 %v91
    %103 = vmatpush1.bf16.msra.mxu0 %v90
    %104 = vmatprep.subr.bf16.mxu0 %v93
    %105 = vmatpush1.bf16.msra.mxu0 %v92
    %106 = vmatprep.subr.bf16.mxu0 0
    %107 = vmatpush1.bf16.msra.mxu0 0
    %108 = vmatprep.subr.bf16.mxu0 0
    %109 = vmatpush1.bf16.msra.mxu0 0
    %110 = vmatprep.subr.bf16.mxu0 0
    %111 = vmatpush1.bf16.msra.mxu0 0
    %112 = vmatprep.subr.bf16.mxu0 0
    %113 = vmatpush1.bf16.msra.mxu0 0
    %114 = vmatprep.subr.bf16.mxu0 0
    %115 = vmatpush1.bf16.msra.mxu0 0
    %116 = vmatprep.subr.bf16.mxu0 0
    %117 = vmatpush1.bf16.msra.mxu0 0
    %118 = vmatprep.subr.bf16.mxu0 0
    %119 = vmatpush1.bf16.msra.mxu0 0
    %120 = vmatprep.subr.bf16.mxu0 0
    %121 = vmatpush1.bf16.msra.mxu0 0
    %122 = vmatprep.subr.bf16.mxu0 0
    %123 = vmatpush1.bf16.msra.mxu0 0
    %124 = vmatprep.subr.bf16.mxu0 0
    %125 = vmatpush1.bf16.msra.mxu0 0
    %126 = vmatprep.subr.bf16.mxu0 0
    %127 = vmatpush1.bf16.msra.mxu0 0
    %128 = vmatprep.subr.bf16.mxu0 0
    %129 = vmatpush1.bf16.msra.mxu0 0
    %130 = vmatprep.subr.bf16.mxu0 0
    %131 = vmatpush1.bf16.msra.mxu0 0
    %132 = vmatprep.subr.bf16.mxu0 0
    %133 = vmatpush1.bf16.msra.mxu0 0
    %134 = vmatprep.mubr.bf16.mxu0 0
    %135 = vmatmul.mubr.bf16.gmra.mrb[0].mxu0 %v100
    %v136 = vpop.f32.mrb[0].mxu0
    %v137 = vadd.f32 %v66, %v136
    %v138 = vpop.f32.mrb[0].mxu0
    %v139 = vadd.f32 %v70, %v138
    %v140 = vpop.f32.mrb[0].mxu0
    %v141 = vadd.f32 %v66, %v140
    %v142 = vpop.f32.mrb[0].mxu0
    %v143 = vadd.f32 %v70, %v142
    %144 = vdwg.mxu0
    %v145 = vmax.f32 %v137, 0.0
    %v146 = vmax.f32 %v139, 0.0
    %v147 = vmax.f32 %v141, 0.0
    %v148 = vmax.f32 %v143, 0.0
    %v149 = vpack.c.bf16 %v147, %v145
    %v150 = vpack.c.bf16 %v148, %v146
    %v151 = vld [vmem:[#allocation2] sm:$0xff]
    %v152 = vld [vmem:[#allocation2 + $0x8] sm:$0xff]
    %v153 = vld [vmem:[#allocation2 + $0x10] sm:$0xff]
    %v154 = vld [vmem:[#allocation2 + $0x18] sm:$0xff]
    %v155 = vld [vmem:[#allocation2 + $0x20] sm:$0xff]
    %v156 = vld [vmem:[#allocation2 + $0x28] sm:$0xff]
    %v157 = vld [vmem:[#allocation2 + $0x30] sm:$0xff]
    %v158 = vld [vmem:[#allocation2 + $0x38] sm:$0xff]
    %v159 = vld [vmem:[#allocation2 + $0x40] sm:$0xff]
    %v160 = vld [vmem:[#allocation2 + $0x48] sm:$0xff]
    %v161 = vld [vmem:[#allocation2 + $0x50] sm:$0xff]
    %v162 = vld [vmem:[#allocation2 + $0x58] sm:$0xff]
    %v163 = vld [vmem:[#allocation2 + $0x60] sm:$0xff]
    %v164 = vld [vmem:[#allocation2 + $0x68] sm:$0xff]
    %v165 = vld [vmem:[#allocation2 + $0x70] sm:$0xff]
    %v166 = vld [vmem:[#allocation2 + $0x78] sm:$0xff]
    %v167 = vld [vmem:[#allocation2 + $0x80] sm:$0xff]
    %v168 = vld [vmem:[#allocation2 + $0x88] sm:$0xff]
    %v169 = vld [vmem:[#allocation2 + $0x90] sm:$0xff]
    %v170 = vld [vmem:[#allocation2 + $0x98] sm:$0xff]
    %v171 = vld [vmem:[#allocation2 + $0xa0] sm:$0xff]
    %v172 = vld [vmem:[#allocation2 + $0xa8] sm:$0xff]
    %v173 = vld [vmem:[#allocation2 + $0xb0] sm:$0xff]
    %v174 = vld [vmem:[#allocation2 + $0xb8] sm:$0xff]
    %v175 = vld [vmem:[#allocation2 + $0xc0] sm:$0xff]
    %v176 = vld [vmem:[#allocation2 + $0xc8] sm:$0xff]
    %v177 = vld [vmem:[#allocation2 + $0xd0] sm:$0xff]
    %v178 = vld [vmem:[#allocation2 + $0xd8] sm:$0xff]
    %v179 = vld [vmem:[#allocation2 + $0xe0] sm:$0xff]
    %v180 = vld [vmem:[#allocation2 + $0xe8] sm:$0xff]
    %v181 = vld [vmem:[#allocation2 + $0xf0] sm:$0xff]
    %v182 = vld [vmem:[#allocation2 + $0xf8] sm:$0xff]
    %v183 = vld [vmem:[%s4] sm:$0x3]
    %v185 = vlaneseq
    %v186 = vshrl.u32 %v185, 7
    %v187 = vsub.s32 0, %v186
    %v188 = vrot.slane %v183, %v187
    %v189 = vlaneseq
    %v190 = vshrl.u32 %v189, 7
    %v191 = vsub.s32 1, %v190
    %v192 = vrot.slane %v183, %v191
    %v227 = vunpack.c.l.b16 %v151
    %v228 = vunpack.c.h.b16 %v151
    %v229 = vunpack.c.l.b16 %v152
    %v230 = vunpack.c.h.b16 %v152
    %v231 = vunpack.c.l.b16 %v153
    %v232 = vunpack.c.h.b16 %v153
    %v233 = vunpack.c.l.b16 %v154
    %v234 = vunpack.c.h.b16 %v154
    %v235 = vunpack.c.l.b16 %v155
    %v236 = vunpack.c.h.b16 %v155
    %v237 = vunpack.c.l.b16 %v156
    %v238 = vunpack.c.h.b16 %v156
    %v239 = vunpack.c.l.b16 %v157
    %v240 = vunpack.c.h.b16 %v157
    %v241 = vunpack.c.l.b16 %v158
    %v242 = vunpack.c.h.b16 %v158
    %v243 = vunpack.c.l.b16 %v159
    %v244 = vunpack.c.h.b16 %v159
    %v245 = vunpack.c.l.b16 %v160
    %v246 = vunpack.c.h.b16 %v160
    %v247 = vunpack.c.l.b16 %v161
    %v248 = vunpack.c.h.b16 %v161
    %v249 = vunpack.c.l.b16 %v162
    %v250 = vunpack.c.h.b16 %v162
    %v251 = vunpack.c.l.b16 %v163
    %v252 = vunpack.c.h.b16 %v163
    %v253 = vunpack.c.l.b16 %v164
    %v254 = vunpack.c.h.b16 %v164
    %v255 = vunpack.c.l.b16 %v165
    %v256 = vunpack.c.h.b16 %v165
    %v257 = vunpack.c.l.b16 %v166
    %v258 = vunpack.c.h.b16 %v166
    %v259 = vunpack.c.l.b16 %v167
    %v260 = vunpack.c.h.b16 %v167
    %v261 = vunpack.c.l.b16 %v168
    %v262 = vunpack.c.h.b16 %v168
    %v263 = vunpack.c.l.b16 %v169
    %v264 = vunpack.c.h.b16 %v169
    %v265 = vunpack.c.l.b16 %v170
    %v266 = vunpack.c.h.b16 %v170
    %v267 = vunpack.c.l.b16 %v171
    %v268 = vunpack.c.h.b16 %v171
    %v269 = vunpack.c.l.b16 %v172
    %v270 = vunpack.c.h.b16 %v172
    %v271 = vunpack.c.l.b16 %v173
    %v272 = vunpack.c.h.b16 %v173
    %v273 = vunpack.c.l.b16 %v174
    %v274 = vunpack.c.h.b16 %v174
    %v275 = vunpack.c.l.b16 %v175
    %v276 = vunpack.c.h.b16 %v175
    %v277 = vunpack.c.l.b16 %v176
    %v278 = vunpack.c.h.b16 %v176
    %v279 = vunpack.c.l.b16 %v177
    %v280 = vunpack.c.h.b16 %v177
    %v281 = vunpack.c.l.b16 %v178
    %v282 = vunpack.c.h.b16 %v178
    %v283 = vunpack.c.l.b16 %v179
    %v284 = vunpack.c.h.b16 %v179
    %v285 = vunpack.c.l.b16 %v180
    %v286 = vunpack.c.h.b16 %v180
    %v287 = vunpack.c.l.b16 %v181
    %v288 = vunpack.c.h.b16 %v181
    %v289 = vunpack.c.l.b16 %v182
    %v290 = vunpack.c.h.b16 %v182
    %v291 = vpack.c.b16 %v229, %v227
    %v292 = vpack.c.b16 %v230, %v228
    %v293 = vpack.c.b16 %v233, %v231
    %v294 = vpack.c.b16 %v234, %v232
    %v295 = vpack.c.b16 %v237, %v235
    %v296 = vpack.c.b16 %v238, %v236
    %v297 = vpack.c.b16 %v241, %v239
    %v298 = vpack.c.b16 %v242, %v240
    %v299 = vpack.c.b16 %v245, %v243
    %v300 = vpack.c.b16 %v246, %v244
    %v301 = vpack.c.b16 %v249, %v247
    %v302 = vpack.c.b16 %v250, %v248
    %v303 = vpack.c.b16 %v253, %v251
    %v304 = vpack.c.b16 %v254, %v252
    %v305 = vpack.c.b16 %v257, %v255
    %v306 = vpack.c.b16 %v258, %v256
    %v307 = vpack.c.b16 %v261, %v259
    %v308 = vpack.c.b16 %v262, %v260
    %v309 = vpack.c.b16 %v265, %v263
    %v310 = vpack.c.b16 %v266, %v264
    %v311 = vpack.c.b16 %v269, %v267
    %v312 = vpack.c.b16 %v270, %v268
    %v313 = vpack.c.b16 %v273, %v271
    %v314 = vpack.c.b16 %v274, %v272
    %v315 = vpack.c.b16 %v277, %v275
    %v316 = vpack.c.b16 %v278, %v276
    %v317 = vpack.c.b16 %v281, %v279
    %v318 = vpack.c.b16 %v282, %v280
    %v319 = vpack.c.b16 %v285, %v283
    %v320 = vpack.c.b16 %v286, %v284
    %v321 = vpack.c.b16 %v289, %v287
    %v322 = vpack.c.b16 %v290, %v288
    %355 = vmatprep.subr.bf16.mxu0 %v292
    %356 = vmatpush1.bf16.msra.mxu0 %v291
    %357 = vmatprep.subr.bf16.mxu0 %v294
    %358 = vmatpush1.bf16.msra.mxu0 %v293
    %359 = vmatprep.subr.bf16.mxu0 %v296
    %360 = vmatpush1.bf16.msra.mxu0 %v295
    %361 = vmatprep.subr.bf16.mxu0 %v298
    %362 = vmatpush1.bf16.msra.mxu0 %v297
    %363 = vmatprep.subr.bf16.mxu0 %v300
    %364 = vmatpush1.bf16.msra.mxu0 %v299
    %365 = vmatprep.subr.bf16.mxu0 %v302
    %366 = vmatpush1.bf16.msra.mxu0 %v301
    %367 = vmatprep.subr.bf16.mxu0 %v304
    %368 = vmatpush1.bf16.msra.mxu0 %v303
    %369 = vmatprep.subr.bf16.mxu0 %v306
    %370 = vmatpush1.bf16.msra.mxu0 %v305
    %371 = vmatprep.subr.bf16.mxu0 %v308
    %372 = vmatpush1.bf16.msra.mxu0 %v307
    %373 = vmatprep.subr.bf16.mxu0 %v310
    %374 = vmatpush1.bf16.msra.mxu0 %v309
    %375 = vmatprep.subr.bf16.mxu0 %v312
    %376 = vmatpush1.bf16.msra.mxu0 %v311
    %377 = vmatprep.subr.bf16.mxu0 %v314
    %378 = vmatpush1.bf16.msra.mxu0 %v313
    %379 = vmatprep.subr.bf16.mxu0 %v316
    %380 = vmatpush1.bf16.msra.mxu0 %v315
    %381 = vmatprep.subr.bf16.mxu0 %v318
    %382 = vmatpush1.bf16.msra.mxu0 %v317
    %383 = vmatprep.subr.bf16.mxu0 %v320
    %384 = vmatpush1.bf16.msra.mxu0 %v319
    %385 = vmatprep.subr.bf16.mxu0 %v322
    %386 = vmatpush1.bf16.msra.mxu0 %v321
    %387 = vmatprep.mubr.bf16.mxu0 %v150
    %388 = vmatmul.mubr.bf16.gmra.mrb[0].mxu0 %v149
    %v389 = vpop.f32.mrb[0].mxu0
    %v390 = vadd.f32 %v188, %v389
    %v391 = vpop.f32.mrb[0].mxu0
    %v392 = vadd.f32 %v192, %v391
    %v393 = vpop.f32.mrb[0].mxu0
    %v394 = vadd.f32 %v188, %v393
    %v395 = vpop.f32.mrb[0].mxu0
    %v396 = vadd.f32 %v192, %v395
    %397 = vdwg.mxu0
    %v398 = vmax.f32 %v390, 0.0
    %v399 = vmax.f32 %v392, 0.0
    %v400 = vmax.f32 %v394, 0.0
    %v401 = vmax.f32 %v396, 0.0
    %v402 = vpack.c.bf16 %v400, %v398
    %v403 = vpack.c.bf16 %v401, %v399
    %v404 = vld [vmem:[#allocation4] sm:$0xf]
    %v405 = vld [vmem:[#allocation4 + $0x4] sm:$0xf]
    %v406 = vld [vmem:[#allocation4 + $0x8] sm:$0xf]
    %v407 = vld [vmem:[#allocation4 + $0xc] sm:$0xf]
    %v408 = vld [vmem:[#allocation4 + $0x10] sm:$0xf]
    %v409 = vld [vmem:[#allocation4 + $0x14] sm:$0xf]
    %v410 = vld [vmem:[#allocation4 + $0x18] sm:$0xf]
    %v411 = vld [vmem:[#allocation4 + $0x1c] sm:$0xf]
    %v412 = vld [vmem:[#allocation4 + $0x20] sm:$0xf]
    %v413 = vld [vmem:[#allocation4 + $0x24] sm:$0xf]
    %v414 = vld [vmem:[#allocation4 + $0x28] sm:$0xf]
    %v415 = vld [vmem:[#allocation4 + $0x2c] sm:$0xf]
    %v416 = vld [vmem:[#allocation4 + $0x30] sm:$0xf]
    %v417 = vld [vmem:[#allocation4 + $0x34] sm:$0xf]
    %v418 = vld [vmem:[#allocation4 + $0x38] sm:$0xf]
    %v419 = vld [vmem:[#allocation4 + $0x3c] sm:$0xf]
    %v420 = vld [vmem:[#allocation4 + $0x40] sm:$0xf]
    %v421 = vld [vmem:[#allocation4 + $0x44] sm:$0xf]
    %v422 = vld [vmem:[#allocation4 + $0x48] sm:$0xf]
    %v423 = vld [vmem:[#allocation4 + $0x4c] sm:$0xf]
    %v424 = vld [vmem:[#allocation4 + $0x50] sm:$0xf]
    %v425 = vld [vmem:[#allocation4 + $0x54] sm:$0xf]
    %v426 = vld [vmem:[#allocation4 + $0x58] sm:$0xf]
    %v427 = vld [vmem:[#allocation4 + $0x5c] sm:$0xf]
    %v428 = vld [vmem:[#allocation4 + $0x60] sm:$0xf]
    %v429 = vld [vmem:[#allocation4 + $0x64] sm:$0xf]
    %v430 = vld [vmem:[#allocation4 + $0x68] sm:$0xf]
    %v431 = vld [vmem:[#allocation4 + $0x6c] sm:$0xf]
    %v432 = vld [vmem:[#allocation4 + $0x70] sm:$0xf]
    %v433 = vld [vmem:[#allocation4 + $0x74] sm:$0xf]
    %v434 = vld [vmem:[#allocation4 + $0x78] sm:$0xf]
    %v435 = vld [vmem:[#allocation4 + $0x7c] sm:$0xf]
    %v436 = vld [vmem:[%s6] sm:$0x1]
    %v438 = vlaneseq
    %v439 = vshrl.u32 %v438, 7
    %v440 = vsub.s32 0, %v439
    %v441 = vrot.slane %v436, %v440
    %v475 = vunpack.c.l.b16 %v404
    %v476 = vunpack.c.l.b16 %v405
    %v477 = vunpack.c.l.b16 %v406
    %v478 = vunpack.c.l.b16 %v407
    %v479 = vunpack.c.l.b16 %v408
    %v480 = vunpack.c.l.b16 %v409
    %v481 = vunpack.c.l.b16 %v410
    %v482 = vunpack.c.l.b16 %v411
    %v483 = vunpack.c.l.b16 %v412
    %v484 = vunpack.c.l.b16 %v413
    %v485 = vunpack.c.l.b16 %v414
    %v486 = vunpack.c.l.b16 %v415
    %v487 = vunpack.c.l.b16 %v416
    %v488 = vunpack.c.l.b16 %v417
    %v489 = vunpack.c.l.b16 %v418
    %v490 = vunpack.c.l.b16 %v419
    %v491 = vunpack.c.l.b16 %v420
    %v492 = vunpack.c.l.b16 %v421
    %v493 = vunpack.c.l.b16 %v422
    %v494 = vunpack.c.l.b16 %v423
    %v495 = vunpack.c.l.b16 %v424
    %v496 = vunpack.c.l.b16 %v425
    %v497 = vunpack.c.l.b16 %v426
    %v498 = vunpack.c.l.b16 %v427
    %v499 = vunpack.c.l.b16 %v428
    %v500 = vunpack.c.l.b16 %v429
    %v501 = vunpack.c.l.b16 %v430
    %v502 = vunpack.c.l.b16 %v431
    %v503 = vunpack.c.l.b16 %v432
    %v504 = vunpack.c.l.b16 %v433
    %v505 = vunpack.c.l.b16 %v434
    %v506 = vunpack.c.l.b16 %v435
    %v507 = vpack.c.b16 %v476, %v475
    %v508 = vpack.c.b16 %v478, %v477
    %v509 = vpack.c.b16 %v480, %v479
    %v510 = vpack.c.b16 %v482, %v481
    %v511 = vpack.c.b16 %v484, %v483
    %v512 = vpack.c.b16 %v486, %v485
    %v513 = vpack.c.b16 %v488, %v487
    %v514 = vpack.c.b16 %v490, %v489
    %v515 = vpack.c.b16 %v492, %v491
    %v516 = vpack.c.b16 %v494, %v493
    %v517 = vpack.c.b16 %v496, %v495
    %v518 = vpack.c.b16 %v498, %v497
    %v519 = vpack.c.b16 %v500, %v499
    %v520 = vpack.c.b16 %v502, %v501
    %v521 = vpack.c.b16 %v504, %v503
    %v522 = vpack.c.b16 %v506, %v505
    %539 = vmatprep.subr.bf16.mxu0 0
    %540 = vmatpush1.bf16.msra.mxu0 %v507
    %541 = vmatprep.subr.bf16.mxu0 0
    %542 = vmatpush1.bf16.msra.mxu0 %v508
    %543 = vmatprep.subr.bf16.mxu0 0
    %544 = vmatpush1.bf16.msra.mxu0 %v509
    %545 = vmatprep.subr.bf16.mxu0 0
    %546 = vmatpush1.bf16.msra.mxu0 %v510
    %547 = vmatprep.subr.bf16.mxu0 0
    %548 = vmatpush1.bf16.msra.mxu0 %v511
    %549 = vmatprep.subr.bf16.mxu0 0
    %550 = vmatpush1.bf16.msra.mxu0 %v512
    %551 = vmatprep.subr.bf16.mxu0 0
    %552 = vmatpush1.bf16.msra.mxu0 %v513
    %553 = vmatprep.subr.bf16.mxu0 0
    %554 = vmatpush1.bf16.msra.mxu0 %v514
    %555 = vmatprep.subr.bf16.mxu0 0
    %556 = vmatpush1.bf16.msra.mxu0 %v515
    %557 = vmatprep.subr.bf16.mxu0 0
    %558 = vmatpush1.bf16.msra.mxu0 %v516
    %559 = vmatprep.subr.bf16.mxu0 0
    %560 = vmatpush1.bf16.msra.mxu0 %v517
    %561 = vmatprep.subr.bf16.mxu0 0
    %562 = vmatpush1.bf16.msra.mxu0 %v518
    %563 = vmatprep.subr.bf16.mxu0 0
    %564 = vmatpush1.bf16.msra.mxu0 %v519
    %565 = vmatprep.subr.bf16.mxu0 0
    %566 = vmatpush1.bf16.msra.mxu0 %v520
    %567 = vmatprep.subr.bf16.mxu0 0
    %568 = vmatpush1.bf16.msra.mxu0 %v521
    %569 = vmatprep.subr.bf16.mxu0 0
    %570 = vmatpush1.bf16.msra.mxu0 %v522
    %571 = vmatprep.mubr.bf16.mxu0 %v403
    %572 = vmatmul.mubr.bf16.gmra.mrb[0].mxu0 %v402
    %v573 = vpop.f32.mrb[0].mxu0
    %v574 = vadd.f32 %v441, %v573
    %v575 = vpop.f32.mrb[0].mxu0
    %v576 = vpop.f32.mrb[0].mxu0
    %v577 = vadd.f32 %v441, %v576
    %v578 = vpop.f32.mrb[0].mxu0
    %579 = vdwg.mxu0
    %v580 = vpack.c.bf16 %v577, %v574
    %v582 = vunpack.c.l.b16 %v580
    %v583 = vunpack.c.h.b16 %v580
    %v584 = vpack.c.b16 %v582, %v582
    %v585 = vpack.c.b16 %v583, %v583
    %588 = vst [vmem:[%s7] sm:$0xf] %v584
    %589 = vst [vmem:[%s7 + $0x4] sm:$0xf] %v585
    // Predicated region
    $region38: #{gaussian_policy_forward.1} parent=1 // pred_check
      _
    $region39: #{gaussian_policy_forward.1} parent=1 // pred_check_branch
      %591 = sbr.rel (0) target = $region41
    $region40: #{gaussian_policy_forward.1} parent=1 // pred_region
      _
    $region41: #{gaussian_policy_forward.1} parent=1 // pred_fallthru
      _
    // Predicated region
    $region42: #{gaussian_policy_forward.1} parent=1 // pred_check
      _
    $region43: #{gaussian_policy_forward.1} parent=1 // pred_check_branch
      %593 = sbr.rel (0) target = $region45
    $region44: #{gaussian_policy_forward.1} parent=1 // pred_region
      _
    $region45: #{gaussian_policy_forward.1} parent=1 // pred_fallthru
      _
    %594 = vsyncpa [#allocation3], 1
    %595 = vsyncpa [#allocation5], 1

</llo_original>
